<compile_context>
chip_gen: v5e
topology: v5e:2x2
jax: 0.10.0
libtpu: 0.0.40
codegen_flags: <defaults>
</compile_context>

<pallas_src>
import functools
import math

import jax
import jax.numpy as jnp
from jax.experimental import pallas as pl
from jax.experimental.pallas import tpu as pltpu


DEFAULT_MAX_TILE_M = 2048  # rows per batch tile (multiple of 8)


def critic_kernel(state_ref, action_ref, w1_ref, b1_ref, w2_ref, b2_ref,
                  w3_ref, b3_ref, o_ref, *, bf16_tanh):
    # Layer 1: in-register concat (matches torch.cat([state, action], -1))
    # followed by ONE bf16 MXU matmul with f32 accumulation.
    x = jnp.concatenate([state_ref[...], action_ref[...]], axis=-1)
    z1 = jnp.dot(x.astype(jnp.bfloat16), w1_ref[...],
                 preferred_element_type=jnp.float32) + b1_ref[...]
    if bf16_tanh:
        h1 = jnp.tanh(z1.astype(jnp.bfloat16))   # bf16 EUP (v6e/v7x)
    else:
        h1 = jnp.tanh(z1).astype(jnp.bfloat16)   # f32 EUP (v5e), cast for MXU

    # Layer 2: bf16 operands, f32 accumulate on the MXU.
    z2 = jnp.dot(h1, w2_ref[...], preferred_element_type=jnp.float32) + b2_ref[...]
    h2 = jnp.tanh(z2.astype(jnp.bfloat16)) if bf16_tanh else jnp.tanh(z2)

    # Layer 3 (N=1): f32 VPU multiply + lane reduction; (tile_m, 1) store.
    prod = h2.astype(jnp.float32) * w3_ref[...]
    o_ref[...] = jnp.sum(prod, axis=-1, keepdims=True) + b3_ref[0, 0]


def _round_up(x, m):
    return ((x + m - 1) // m) * m


def _bf16_eup_available():
    # bf16 transcendental path exists on v6e / v7x; v5e (and older) use f32.
    try:
        kind = jax.devices()[0].device_kind.lower()
    except Exception:
        return False
    return any(tag in kind for tag in ("v6", "v7", "6e", "7x"))


def _choose_tile_m(batch, max_tile):
    if batch <= 8:
        return batch                              # full-dim block (always legal)
    tile = _round_up(pl.cdiv(batch, 2), 8)        # >=2 grid steps for v7x megacore
    return min(tile, max_tile)


def critic_forward(state, action, params, *, max_tile_m=DEFAULT_MAX_TILE_M,
                   bf16_tanh=None):
    """Batch-tiled Pallas forward; returns [batch, 1] like the PyTorch module."""
    w1, b1, w2, b2, w3, b3 = params
    if bf16_tanh is None:
        bf16_tanh = _bf16_eup_available()

    # Weight cast happens once per call in the wrapper (O(weights)), not per
    # grid step inside the kernel.  Biases and W3 stay f32.
    w1_bf = w1.astype(jnp.bfloat16)
    w2_bf = w2.astype(jnp.bfloat16)

    batch, ns = state.shape
    na = action.shape[1]
    d_in = ns + na
    hidden = w2.shape[0]

    tile_m = _choose_tile_m(batch, max_tile_m)
    grid = (pl.cdiv(batch, tile_m),)

    const2 = lambda i: (0, 0)  # weights / biases stay VMEM-resident

    def weight_spec(shape):
        kwargs = {}
        if hidden >= 512:
            # Grid-invariant blocks don't need double-buffering at large hidden.
            kwargs["pipeline_mode"] = pl.Buffered(1)
        return pl.BlockSpec(shape, const2, **kwargs)

    flops = 2 * batch * (d_in * hidden + hidden * hidden + hidden)
    bytes_accessed = (state.dtype.itemsize * batch * ns
                      + action.dtype.itemsize * batch * na
                      + 4 * batch                       # output
                      + 2 * (d_in * hidden + hidden * hidden)  # bf16 weights
                      + 4 * (3 * hidden + 1))           # f32 biases + w3
    cost = pl.CostEstimate(flops=flops,
                           transcendentals=2 * batch * hidden,
                           bytes_accessed=bytes_accessed)

    kernel = functools.partial(critic_kernel, bf16_tanh=bf16_tanh)

    return pl.pallas_call(
        kernel,
        out_shape=jax.ShapeDtypeStruct((batch, 1), jnp.float32),
        grid=grid,
        in_specs=[
            pl.BlockSpec((tile_m, ns), lambda i: (i, 0)),       # state tile
            pl.BlockSpec((tile_m, na), lambda i: (i, 0)),       # action tile
            weight_spec((d_in, hidden)),                        # W1 (bf16)
            weight_spec((1, hidden)),                           # b1 (f32)
            weight_spec((hidden, hidden)),                      # W2 (bf16)
            weight_spec((1, hidden)),                           # b2 (f32)
            weight_spec((1, hidden)),                           # W3 row (f32)
            pl.BlockSpec(memory_space=pltpu.MemorySpace.SMEM),  # b3 scalar
        ],
        out_specs=pl.BlockSpec((tile_m, 1), lambda i: (i, 0)),
        compiler_params=pltpu.CompilerParams(
            dimension_semantics=("parallel",),   # v7x: 2 TCs split the batch
            vmem_limit_bytes=32 * 1024 * 1024,
        ),
        cost_estimate=cost,
    )(state, action, w1_bf, b1, w2_bf, b2, w3, b3)


def xavier_uniform(key, fan_in, fan_out, gain):
    # Matches torch.nn.init.xavier_uniform_(w, gain): U(-a, a),
    # a = gain * sqrt(6 / (fan_in + fan_out)).  Returned as [in, out].
    a = gain * math.sqrt(6.0 / (fan_in + fan_out))
    return jax.random.uniform(key, (fan_in, fan_out), dtype=jnp.float32,
                              minval=-a, maxval=a)


def init_critic_params(key, num_state_inputs, num_actions, hidden_size):
    d_in = num_state_inputs + num_actions
    k1, k2, k3 = jax.random.split(key, 3)
    w1 = xavier_uniform(k1, d_in, hidden_size, gain=0.5)       # (d_in, hidden)
    b1 = jnp.zeros((1, hidden_size), jnp.float32)
    w2 = xavier_uniform(k2, hidden_size, hidden_size, gain=0.5)
    b2 = jnp.zeros((1, hidden_size), jnp.float32)
    w3 = xavier_uniform(k3, hidden_size, 1, gain=0.5).T        # stored as (1, hidden)
    b3 = jnp.zeros((1, 1), jnp.float32)
    return (w1, b1, w2, b2, w3, b3)


def critic_reference_f32(state, action, params):
    # Pure-f32 reference matching the PyTorch module exactly.
    w1, b1, w2, b2, w3, b3 = params
    x = jnp.concatenate([state, action], axis=-1)
    h1 = jnp.tanh(x @ w1 + b1)
    h2 = jnp.tanh(h1 @ w2 + b2)
    return h2 @ w3.T + b3


def critic_reference_matched(state, action, params, bf16_tanh):
    # Mimics the kernel's bf16-operand / f32-accumulate numerics.
    w1, b1, w2, b2, w3, b3 = params
    bf16, f32 = jnp.bfloat16, jnp.float32
    x = jnp.concatenate([state, action], axis=-1).astype(bf16)
    z1 = jnp.dot(x, w1.astype(bf16), preferred_element_type=f32) + b1
    h1 = jnp.tanh(z1.astype(bf16)) if bf16_tanh else jnp.tanh(z1).astype(bf16)
    z2 = jnp.dot(h1, w2.astype(bf16), preferred_element_type=f32) + b2
    h2 = jnp.tanh(z2.astype(bf16)) if bf16_tanh else jnp.tanh(z2)
    return jnp.sum(h2.astype(f32) * w3, axis=-1, keepdims=True) + b3[0, 0]


if __name__ == "__main__":
    num_state_inputs = 8
    num_actions = 4
    hidden_size = 32
    batch = 2

    key = jax.random.PRNGKey(0)
    k_params, k_state, k_action = jax.random.split(key, 3)

    params = init_critic_params(k_params, num_state_inputs, num_actions, hidden_size)
    state = jax.random.normal(k_state, (batch, num_state_inputs), dtype=jnp.float32)
    action = jax.random.normal(k_action, (batch, num_actions), dtype=jnp.float32)

    bf16_tanh = _bf16_eup_available()
    out = critic_forward(state, action, params, bf16_tanh=bf16_tanh)
    out = jax.block_until_ready(out)
    assert out.shape == (batch, 1), out.shape

    ref_match = critic_reference_matched(state, action, params, bf16_tanh)
    ref_f32 = critic_reference_f32(state, action, params)
    # Check vs a reference with matching bf16-operand numerics.
    assert jnp.allclose(out, ref_match, atol=1e-2, rtol=1e-2), (out, ref_match)
    # Loose check vs the pure-f32 PyTorch-equivalent forward (bf16 rounding only).
    assert jnp.allclose(out, ref_f32, atol=5e-2, rtol=5e-2), (out, ref_f32)

    print("KERNEL_OK")
</pallas_src>

<mosaic_0001>
module attributes {stable_mosaic.version = 11 : i64} {
  func.func @critic_kernel(%arg0: i32, %arg1: memref<2x8xf32, #tpu.memory_space<vmem>>, %arg2: memref<2x4xf32, #tpu.memory_space<vmem>>, %arg3: memref<12x32xbf16, #tpu.memory_space<vmem>>, %arg4: memref<1x32xf32, #tpu.memory_space<vmem>>, %arg5: memref<32x32xbf16, #tpu.memory_space<vmem>>, %arg6: memref<1x32xf32, #tpu.memory_space<vmem>>, %arg7: memref<1x32xf32, #tpu.memory_space<vmem>>, %arg8: memref<1x1xf32, #tpu.memory_space<smem>>, %arg9: memref<2x1xf32, #tpu.memory_space<vmem>>) attributes {dimension_semantics = [#tpu.dimension_semantics<parallel>], iteration_bounds = array<i64: 1>, scalar_prefetch = 0 : i64, scratch_operands = 0 : i64, tpu.core_type = #tpu.core_type<tc>, window_params = [{transform_indices = @transform_0, window_bounds = array<i64: 2, 8>}, {transform_indices = @transform_1, window_bounds = array<i64: 2, 4>}, {pipeline_mode = #tpu.pipeline_mode<synchronous>, transform_indices = @transform_2, window_bounds = array<i64: 12, 32>}, {pipeline_mode = #tpu.pipeline_mode<synchronous>, transform_indices = @transform_3, window_bounds = array<i64: 1, 32>}, {pipeline_mode = #tpu.pipeline_mode<synchronous>, transform_indices = @transform_4, window_bounds = array<i64: 32, 32>}, {pipeline_mode = #tpu.pipeline_mode<synchronous>, transform_indices = @transform_5, window_bounds = array<i64: 1, 32>}, {pipeline_mode = #tpu.pipeline_mode<synchronous>, transform_indices = @transform_6, window_bounds = array<i64: 1, 32>}, {transform_indices = @transform_7, window_bounds = array<i64: 1, 1>}, {transform_indices = @transform_8, window_bounds = array<i64: 2, 1>}]} {
    %c0 = arith.constant 0 : index
    %c0_0 = arith.constant 0 : index
    %0 = vector.load %arg1[%c0, %c0_0] : memref<2x8xf32, #tpu.memory_space<vmem>>, vector<2x8xf32>
    %c0_1 = arith.constant 0 : index
    %c0_2 = arith.constant 0 : index
    %1 = vector.load %arg2[%c0_1, %c0_2] : memref<2x4xf32, #tpu.memory_space<vmem>>, vector<2x4xf32>
    %2 = tpu.concatenate %0, %1 in 1 : vector<2x8xf32>, vector<2x4xf32> -> vector<2x12xf32>
    %3 = arith.truncf %2 : vector<2x12xf32> to vector<2x12xbf16>
    %c0_3 = arith.constant 0 : index
    %c0_4 = arith.constant 0 : index
    %4 = vector.load %arg3[%c0_3, %c0_4] : memref<12x32xbf16, #tpu.memory_space<vmem>>, vector<12x32xbf16>
    %cst = arith.constant dense<0.000000e+00> : vector<2x32xf32>
    %5 = tpu.matmul %3, %4, %cst {dimension_numbers = #tpu.dot_dimension_numbers<[1], [0], [0], [1], [0, 0, 1, 1], [], []>} : vector<2x12xbf16>, vector<12x32xbf16>, vector<2x32xf32> -> vector<2x32xf32>
    %c0_5 = arith.constant 0 : index
    %c0_6 = arith.constant 0 : index
    %6 = vector.load %arg4[%c0_5, %c0_6] : memref<1x32xf32, #tpu.memory_space<vmem>>, vector<1x32xf32>
    %7 = vector.broadcast %6 : vector<1x32xf32> to vector<2x32xf32>
    %8 = arith.addf %5, %7 : vector<2x32xf32>
    %9 = math.tanh %8 : vector<2x32xf32>
    %10 = arith.truncf %9 : vector<2x32xf32> to vector<2x32xbf16>
    %c0_7 = arith.constant 0 : index
    %c0_8 = arith.constant 0 : index
    %11 = vector.load %arg5[%c0_7, %c0_8] : memref<32x32xbf16, #tpu.memory_space<vmem>>, vector<32x32xbf16>
    %cst_9 = arith.constant dense<0.000000e+00> : vector<2x32xf32>
    %12 = tpu.matmul %10, %11, %cst_9 {dimension_numbers = #tpu.dot_dimension_numbers<[1], [0], [0], [1], [0, 0, 1, 1], [], []>} : vector<2x32xbf16>, vector<32x32xbf16>, vector<2x32xf32> -> vector<2x32xf32>
    %c0_10 = arith.constant 0 : index
    %c0_11 = arith.constant 0 : index
    %13 = vector.load %arg6[%c0_10, %c0_11] : memref<1x32xf32, #tpu.memory_space<vmem>>, vector<1x32xf32>
    %14 = vector.broadcast %13 : vector<1x32xf32> to vector<2x32xf32>
    %15 = arith.addf %12, %14 : vector<2x32xf32>
    %16 = math.tanh %15 : vector<2x32xf32>
    %c0_12 = arith.constant 0 : index
    %c0_13 = arith.constant 0 : index
    %17 = vector.load %arg7[%c0_12, %c0_13] : memref<1x32xf32, #tpu.memory_space<vmem>>, vector<1x32xf32>
    %18 = vector.broadcast %17 : vector<1x32xf32> to vector<2x32xf32>
    %19 = arith.mulf %16, %18 : vector<2x32xf32>
    %cst_14 = arith.constant dense<0.000000e+00> : vector<2xf32>
    %20 = vector.multi_reduction <add>, %19, %cst_14 [1] : vector<2x32xf32> to vector<2xf32>
    %21 = vector.shape_cast %20 : vector<2xf32> to vector<2x1xf32>
    %c0_15 = arith.constant 0 : index
    %c0_16 = arith.constant 0 : index
    %22 = memref.load %arg8[%c0_15, %c0_16] : memref<1x1xf32, #tpu.memory_space<smem>>
    %23 = vector.broadcast %22 : f32 to vector<2x1xf32>
    %24 = arith.addf %21, %23 : vector<2x1xf32>
    %c0_17 = arith.constant 0 : index
    %c0_18 = arith.constant 0 : index
    %25 = vector.load %arg9[%c0_17, %c0_18] : memref<2x1xf32, #tpu.memory_space<vmem>>, vector<2x1xf32>
    tpu.vector_store %arg9[%c0_17, %c0_18], %24 {strides = array<i32>} : memref<2x1xf32, #tpu.memory_space<vmem>>, vector<2x1xf32>,
    return
  }
  func.func @transform_0(%arg0: i32) -> (i32, i32) {
    %c0_i32 = arith.constant 0 : i32
    %c0_i32_0 = arith.constant 0 : i32
    return %arg0, %c0_i32 : i32, i32
  }
  func.func @transform_1(%arg0: i32) -> (i32, i32) {
    %c0_i32 = arith.constant 0 : i32
    %c0_i32_0 = arith.constant 0 : i32
    return %arg0, %c0_i32 : i32, i32
  }
  func.func @transform_2(%arg0: i32) -> (i32, i32) {
    %c0_i32 = arith.constant 0 : i32
    %c0_i32_0 = arith.constant 0 : i32
    %c0_i32_1 = arith.constant 0 : i32
    return %c0_i32, %c0_i32_0 : i32, i32
  }
  func.func @transform_3(%arg0: i32) -> (i32, i32) {
    %c0_i32 = arith.constant 0 : i32
    %c0_i32_0 = arith.constant 0 : i32
    %c0_i32_1 = arith.constant 0 : i32
    return %c0_i32, %c0_i32_0 : i32, i32
  }
  func.func @transform_4(%arg0: i32) -> (i32, i32) {
    %c0_i32 = arith.constant 0 : i32
    %c0_i32_0 = arith.constant 0 : i32
    %c0_i32_1 = arith.constant 0 : i32
    return %c0_i32, %c0_i32_0 : i32, i32
  }
  func.func @transform_5(%arg0: i32) -> (i32, i32) {
    %c0_i32 = arith.constant 0 : i32
    %c0_i32_0 = arith.constant 0 : i32
    %c0_i32_1 = arith.constant 0 : i32
    return %c0_i32, %c0_i32_0 : i32, i32
  }
  func.func @transform_6(%arg0: i32) -> (i32, i32) {
    %c0_i32 = arith.constant 0 : i32
    %c0_i32_0 = arith.constant 0 : i32
    %c0_i32_1 = arith.constant 0 : i32
    return %c0_i32, %c0_i32_0 : i32, i32
  }
  func.func @transform_7(%arg0: i32) -> (i32, i32) {
    %c0_i32 = arith.constant 0 : i32
    %c0_i32_0 = arith.constant 0 : i32
    %c0_i32_1 = arith.constant 0 : i32
    return %c0_i32, %c0_i32_0 : i32, i32
  }
  func.func @transform_8(%arg0: i32) -> (i32, i32) {
    %c0_i32 = arith.constant 0 : i32
    %c0_i32_0 = arith.constant 0 : i32
    return %arg0, %c0_i32 : i32, i32
  }
}

</mosaic_0001>

<llo_original>
// kernel: tpu_custom_call.1
$region0: #{tpu_custom_call.1}
  #allocation0 [shape = 'u32[]', space=smem, size = 0x4, offset = 0x4, fixed_abs, tag = 'smem constant byte address 0x4 - core index']
  #allocation1 [shape = 'u32[72,128]{1,0:T(1,128)}', space=vmem, size = 0x9000, scoped, tag = 'internal scratch']
  #allocation2 [shape = 'f32[1,1]{1,0:T(1,128)S(6)}', space=smem, size = 0x200, scoped, tag = 'scoped memory for tpu_custom_call.1']
  %s0 = inlined_call_operand.vmem [shape: f32[2,8], index: 0, kind: input, shape index: {}]
  %s1 = inlined_call_operand.hbm [shape: f32[2,4], index: 1, kind: input, shape index: {}]
  %s2 = inlined_call_operand.hbm [shape: bf16[12,32], index: 2, kind: input, shape index: {}]
  %s3 = inlined_call_operand.vmem [shape: f32[1,32], index: 3, kind: input, shape index: {}]
  %s4 = inlined_call_operand.hbm [shape: bf16[32,32], index: 4, kind: input, shape index: {}]
  %s5 = inlined_call_operand.vmem [shape: f32[1,32], index: 5, kind: input, shape index: {}]
  %s6 = inlined_call_operand.vmem [shape: f32[1,32], index: 6, kind: input, shape index: {}]
  %s7 = inlined_call_operand.<no memory space> [shape: f32[1,1], index: 7, kind: input, shape index: {}]
  %s8 = inlined_call_operand.vmem [shape: f32[2,1], index: 8, kind: output, shape index: {}]
  %s9 = sld [smem:[#allocation0]]
  $region54: #{tpu_custom_call.1} parent=0
    _
  %s11 = ssub.s32 1, %s9
  %s12 = scalar_select 0, %s11, %s9
  %13 = sst [smem:[#allocation2]] %s7
  $region1: #{tpu_custom_call.1} parent=0
    #allocation3 [shape = 'u8[1024]{0}', space=vmem, size = 0x400, scoped, tag = 'input window, operand 1, single buffered']
    #allocation4 [shape = 's32[1]{0}', space=sflag, size = 0x4, scoped, tag = 'scoped memory for tpu_custom_call.1']
    #allocation5 [shape = 'u8[4096]{0}', space=vmem, size = 0x1000, scoped, tag = 'input window, operand 2, single buffered']
    #allocation6 [shape = 's32[1]{0}', space=sflag, size = 0x4, scoped, tag = 'scoped memory for tpu_custom_call.1']
    #allocation7 [shape = 'u8[8192]{0}', space=vmem, size = 0x2000, scoped, tag = 'input window, operand 4, single buffered']
    %14 = vsyncpa [#allocation4], 0
    %15 = vsyncpa [#allocation6], 0
    // Predicated region
    $region2: #{tpu_custom_call.1} parent=1 // pred_check
      _
    $region3: #{tpu_custom_call.1} parent=1 // pred_check_branch
      %17 = sbr.rel (0) target = $region5
    $region4: #{tpu_custom_call.1} parent=1 // pred_region
      _
    $region5: #{tpu_custom_call.1} parent=1 // pred_fallthru
      _
    // Predicated region
    $region6: #{tpu_custom_call.1} parent=1 // pred_check
      _
    $region7: #{tpu_custom_call.1} parent=1 // pred_check_branch
      %19 = sbr.rel (0) target = $region9
    $region8: #{tpu_custom_call.1} parent=1 // pred_region
      %21 = vsyncadd [#allocation4], 0
      %s23 = sshll.u32 %s1, 4
      %s24 = int_to_ptr.hbm [resolvable:$true] %s23
      %s25 = sshll.u32 [#allocation3], 4
      %s26 = int_to_ptr.vmem [resolvable:$true] %s25
      %28 = dma.hbm_to_vmem [thread:$0]  %s24, 32, %s26, [#allocation4]
    $region9: #{tpu_custom_call.1} parent=1 // pred_fallthru
      _
    // Predicated region
    $region10: #{tpu_custom_call.1} parent=1 // pred_check
      _
    $region11: #{tpu_custom_call.1} parent=1 // pred_check_branch
      %30 = sbr.rel (0) target = $region13
    $region12: #{tpu_custom_call.1} parent=1 // pred_region
      %32 = vsyncadd [#allocation6], 0
      %s33 = sshll.u32 %s2, 4
      %s34 = int_to_ptr.hbm [resolvable:$true] %s33
      %s35 = sshll.u32 [#allocation5], 4
      %s36 = int_to_ptr.vmem [resolvable:$true] %s35
      %41 = dma.hbm_to_vmem [thread:$0]  %s34, 128, %s36, [#allocation6], 64, 64, 4
    $region13: #{tpu_custom_call.1} parent=1 // pred_fallthru
      _
    // Predicated region
    $region14: #{tpu_custom_call.1} parent=1 // pred_check
      _
    $region15: #{tpu_custom_call.1} parent=1 // pred_check_branch
      %43 = sbr.rel (0) target = $region17
    $region16: #{tpu_custom_call.1} parent=1 // pred_region
      _
    $region17: #{tpu_custom_call.1} parent=1 // pred_fallthru
      _
    // Predicated region
    $region18: #{tpu_custom_call.1} parent=1 // pred_check
      _
    $region19: #{tpu_custom_call.1} parent=1 // pred_check_branch
      %45 = sbr.rel (0) target = $region21
    $region20: #{tpu_custom_call.1} parent=1 // pred_region
      %47 = vsyncadd [#allocation6], 0
      %s48 = sshll.u32 %s4, 4
      %s49 = int_to_ptr.hbm [resolvable:$true] %s48
      %s50 = sshll.u32 [#allocation7], 4
      %s51 = int_to_ptr.vmem [resolvable:$true] %s50
      %56 = dma.hbm_to_vmem [thread:$0]  %s49, 256, %s51, [#allocation6], 64, 64, 4
    $region21: #{tpu_custom_call.1} parent=1 // pred_fallthru
      _
    // Predicated region
    $region22: #{tpu_custom_call.1} parent=1 // pred_check
      _
    $region23: #{tpu_custom_call.1} parent=1 // pred_check_branch
      %58 = sbr.rel (0) target = $region25
    $region24: #{tpu_custom_call.1} parent=1 // pred_region
      _
    $region25: #{tpu_custom_call.1} parent=1 // pred_fallthru
      _
    // Predicated region
    $region26: #{tpu_custom_call.1} parent=1 // pred_check
      _
    $region27: #{tpu_custom_call.1} parent=1 // pred_check_branch
      %60 = sbr.rel (0) target = $region29
    $region28: #{tpu_custom_call.1} parent=1 // pred_region
      _
    $region29: #{tpu_custom_call.1} parent=1 // pred_fallthru
      _
    // Predicated region
    $region30: #{tpu_custom_call.1} parent=1 // pred_check
      _
    $region31: #{tpu_custom_call.1} parent=1 // pred_check_branch
      %62 = sbr.rel (0) target = $region33
    $region32: #{tpu_custom_call.1} parent=1 // pred_region
      _
    $region33: #{tpu_custom_call.1} parent=1 // pred_fallthru
      _
    // Predicated region
    $region34: #{tpu_custom_call.1} parent=1 // pred_check
      _
    $region35: #{tpu_custom_call.1} parent=1 // pred_check_branch
      %64 = sbr.rel (0) target = $region37
    $region36: #{tpu_custom_call.1} parent=1 // pred_region
      %66 = dma.done [#allocation4], 32
    $region37: #{tpu_custom_call.1} parent=1 // pred_fallthru
      _
    // Predicated region
    $region38: #{tpu_custom_call.1} parent=1 // pred_check
      _
    $region39: #{tpu_custom_call.1} parent=1 // pred_check_branch
      %68 = sbr.rel (0) target = $region41
    $region40: #{tpu_custom_call.1} parent=1 // pred_region
      %70 = dma.done [#allocation6], 128
    $region41: #{tpu_custom_call.1} parent=1 // pred_fallthru
      _
    // Predicated region
    $region42: #{tpu_custom_call.1} parent=1 // pred_check
      _
    $region43: #{tpu_custom_call.1} parent=1 // pred_check_branch
      %72 = sbr.rel (0) target = $region45
    $region44: #{tpu_custom_call.1} parent=1 // pred_region
      %74 = dma.done [#allocation6], 256
    $region45: #{tpu_custom_call.1} parent=1 // pred_fallthru
      _
    %v76 = vld [vmem:[%s0] sm:$0x3]
    %v77 = vld [vmem:[#allocation3] sm:$0x3]
    %79 = vrot.lane.b32.xlu0 %v77, 8
    %v80 = vpop.permute.xlu0 %79
    %vm82 = vcmask 64512
    %v83 = vsel %vm82, %v76, %v80
    %v84 = vpack.c.bf16 %v83, %v83
    %v85 = vld [vmem:[#allocation5] sm:$0xf]
    %v86 = vld [vmem:[#allocation5 + $0x4] sm:$0x3]
    %v87 = vld [vmem:[%s3] sm:$0x1]
    %v89 = vperm.slane %v87, 0
    %v93 = vunpack.c.l.b16 %v85
    %v94 = vunpack.c.l.b16 %v86
    %v95 = vpack.c.b16 %v94, %v93
    %vm96 = vcmask 97280
    %v98 = vsel %vm96, %v84, 0
    %vm100 = vcmask 1045504
    %v102 = vsel %vm100, %v95, 0
    %104 = vmatpush.bf16.msra.mxu0 0
    %105 = vmatpush.bf16.msra.mxu0 0
    %106 = vmatpush.bf16.msra.mxu0 0
    %107 = vmatpush.bf16.msra.mxu0 0
    %108 = vmatpush.bf16.msra.mxu0 0
    %109 = vmatpush.bf16.msra.mxu0 0
    %110 = vmatpush.bf16.msra.mxu0 0
    %111 = vmatpush.bf16.msra.mxu0 %v102
    %112 = vmatmul.bf16.gmra.mxu0 %v98
    %v113 = vpop.f32.mrf.mxu0
    %v114 = vadd.f32 %v89, %v113
    %v115 = vpop.f32.mrf.mxu0
    %116 = vdwg.mxu0
    %v117 = vtanh.pop %v114
    %v118 = vpack.c.bf16 %v117, %v117
    %v119 = vld [vmem:[#allocation7] sm:$0xf]
    %v120 = vld [vmem:[#allocation7 + $0x4] sm:$0xf]
    %v121 = vld [vmem:[#allocation7 + $0x8] sm:$0xf]
    %v122 = vld [vmem:[#allocation7 + $0xc] sm:$0xf]
    %v123 = vld [vmem:[%s5] sm:$0x1]
    %v125 = vperm.slane %v123, 0
    %v131 = vunpack.c.l.b16 %v119
    %v132 = vunpack.c.l.b16 %v120
    %v133 = vunpack.c.l.b16 %v121
    %v134 = vunpack.c.l.b16 %v122
    %v135 = vpack.c.b16 %v132, %v131
    %v136 = vpack.c.b16 %v134, %v133
    %vm139 = vcmask 261120
    %v141 = vsel %vm139, %v118, 0
    %143 = vmatpush.bf16.msra.mxu0 0
    %144 = vmatpush.bf16.msra.mxu0 0
    %145 = vmatpush.bf16.msra.mxu0 0
    %146 = vmatpush.bf16.msra.mxu0 0
    %147 = vmatpush.bf16.msra.mxu0 0
    %148 = vmatpush.bf16.msra.mxu0 0
    %149 = vmatpush.bf16.msra.mxu0 %v136
    %150 = vmatpush.bf16.msra.mxu0 %v135
    %151 = vmatmul.bf16.gmra.mxu0 %v141
    %v152 = vpop.f32.mrf.mxu0
    %v153 = vadd.f32 %v125, %v152
    %v154 = vpop.f32.mrf.mxu0
    %155 = vdwg.mxu0
    %v156 = vtanh.pop %v153
    %v157 = vld [vmem:[%s6] sm:$0x1]
    %v159 = vperm.slane %v157, 0
    %v161 = vmul.f32 %v156, %v159
    %vm162 = vcmask 254976
    %v163 = vsel %vm162, %v161, 0.0
    %164 = vadd.xlane.f32.xlu0 %v163
    %v165 = vpop.xlane.xlu0 %164
    %s166 = sld [smem:[#allocation2]]
    %v167 = vstv %s166
    %v168 = vadd.f32 %v165, %v167
    %vm169 = vcmask 1024
    %170 = vst.msk [vmem:[%s8] sm:$0x3] %vm169, %v168
    // Predicated region
    $region46: #{tpu_custom_call.1} parent=1 // pred_check
      _
    $region47: #{tpu_custom_call.1} parent=1 // pred_check_branch
      %172 = sbr.rel (0) target = $region49
    $region48: #{tpu_custom_call.1} parent=1 // pred_region
      _
    $region49: #{tpu_custom_call.1} parent=1 // pred_fallthru
      _
    // Predicated region
    $region50: #{tpu_custom_call.1} parent=1 // pred_check
      _
    $region51: #{tpu_custom_call.1} parent=1 // pred_check_branch
      %174 = sbr.rel (0) target = $region53
    $region52: #{tpu_custom_call.1} parent=1 // pred_region
      _
    $region53: #{tpu_custom_call.1} parent=1 // pred_fallthru
      _
    %175 = vsyncpa [#allocation4], 1
    %176 = vsyncpa [#allocation6], 1

</llo_original>
